<compile_context>
chip_gen: v6e
topology: v6e:2x2x1
jax: 0.10.0
libtpu: 0.0.40
codegen_flags: <defaults>
</compile_context>

<pallas_src>
import math

import jax
import jax.numpy as jnp
from jax import lax
from jax.experimental import pallas as pl
from jax.experimental.pallas import tpu as pltpu


def _make_tcn_kernel(layer_meta):
    """Builds the fused whole-TCN kernel.

    Ref layout per grid step (one (C, lane_tile) tile of one batch element):
      refs[0]                x tile            (C0, TL)      f32
      per layer i:           w1 (rows, Ci) bf16, b1 (rows, 1) f32,
                             w2 (Co, Co)   bf16, b2 (Co, 1)   f32
                             where rows = 2*Co when the block has a 1x1
                             downsample (its weights are concatenated below
                             conv1's), else rows = Co.
      refs[-1]               output tile       (C_last, TL)  f32

    layer_meta: tuple of (has_downsample, c_out) per temporal block.
    """

    def kernel(*refs):
        x_ref = refs[0]
        o_ref = refs[-1]
        a = x_ref[...].astype(jnp.float32)          # activations, kept in f32
        idx = 1
        for has_down, c_out in layer_meta:
            w1, b1, w2, b2 = refs[idx], refs[idx + 1], refs[idx + 2], refs[idx + 3]
            idx += 4
            a_bf = a.astype(jnp.bfloat16)
            # conv1 (K=1 -> one MXU matmul).  When the block has a 1x1
            # downsample its rows are fused below conv1's rows, so this single
            # matmul also produces the residual branch.
            f = jnp.dot(w1[...], a_bf, preferred_element_type=jnp.float32) + b1[...]
            if has_down:
                h = jnp.maximum(f[:c_out], 0.0)       # conv1 + bias + relu1
                res = f[c_out:]                       # 1x1 downsample (linear)
            else:
                h = jnp.maximum(f, 0.0)               # conv1 + bias + relu1
                res = a                               # identity residual
            # TODO(synk): dropout1/dropout2 are identity (inference semantics).
            out = jnp.dot(w2[...], h.astype(jnp.bfloat16),
                          preferred_element_type=jnp.float32) + b2[...]
            out = jnp.maximum(out, 0.0)               # conv2 + bias + relu2
            a = jnp.maximum(out + res, 0.0)           # residual add + final relu
        o_ref[...] = a.astype(o_ref.dtype)

    return kernel


def _pick_lane_tile(N, L_pad, desired):
    """Largest 128-aligned tile <= desired that divides L_pad while keeping the
    total number of grid steps >= 2 (v7x has 2 TensorCores sharing a 'parallel'
    grid).  The default desired=512 is 256-aligned for the v6e/v7x MXU; 128 is
    always accepted as a fallback (it already fills v5e's 128x128 MXU)."""
    best = 128
    t = 128
    while t <= min(desired, L_pad):
        if L_pad % t == 0 and (N * (L_pad // t) >= 2 or t == 128):
            best = t
        t += 128
    return best


def tcn_forward(x, layer_params, kernel_size, *, lane_tile=512):
    """Fused TCN forward: x (N, Cin, L) f32 -> (N, C_last, L) f32.

    The reference PyTorch module has no Chomp1d, so its residual add is only
    shape-valid when (kernel_size - 1) * dilation == 0, i.e. kernel_size == 1.
    We implement exactly that (working) configuration.
    """
    assert kernel_size == 1, "reference TCN (no Chomp1d) is only valid for K=1"
    N, C0, L = x.shape
    C_last = layer_params[-1]["w1"].shape[0]

    # Tile the native time axis (already the lane axis) -- no transposes.
    L_pad = pl.cdiv(L, 128) * 128
    lane_tile = _pick_lane_tile(N, L_pad, max(lane_tile, 128))
    n_tiles = L_pad // lane_tile
    xp = x if L_pad == L else jnp.pad(x, ((0, 0), (0, 0), (0, L_pad - L)))

    args = [xp]
    in_specs = [
        pl.BlockSpec((pl.Squeezed(), C0, lane_tile), lambda n, t: (n, 0, t)),
    ]
    # Grid-invariant weights/biases: whole arrays placed in VMEM once
    # (no per-step re-DMA, no double-buffering).
    wspec = pl.BlockSpec(memory_space=pltpu.MemorySpace.VMEM)

    layer_meta = []
    flops = 0
    param_bytes = 0
    for p in layer_params:
        c_out, c_in = p["w1"].shape[0], p["w1"].shape[1]
        has_down = "wd" in p
        # K == 1: squeeze the tap dim.  Fuse the 1x1 downsample into conv1 by
        # concatenating its rows (and bias) below conv1's.
        w1 = p["w1"][:, :, 0]
        b1 = p["b1"]
        if has_down:
            w1 = jnp.concatenate([w1, p["wd"][:, :, 0]], axis=0)
            b1 = jnp.concatenate([b1, p["bd"]], axis=0)
        w1 = w1.astype(jnp.bfloat16)          # bf16 MXU operands
        b1 = b1.reshape(-1, 1)                # f32 bias, broadcast over lanes
        w2 = p["w2"][:, :, 0].astype(jnp.bfloat16)
        b2 = p["b2"].reshape(c_out, 1)
        args += [w1, b1, w2, b2]
        in_specs += [wspec, wspec, wspec, wspec]
        layer_meta.append((has_down, c_out))
        flops += 2 * N * L_pad * (w1.shape[0] * c_in + c_out * c_out)
        param_bytes += w1.size * 2 + w2.size * 2 + b1.size * 4 + b2.size * 4

    bytes_accessed = xp.size * 4 + N * C_last * L_pad * 4 + param_bytes

    yf = pl.pallas_call(
        _make_tcn_kernel(tuple(layer_meta)),
        out_shape=jax.ShapeDtypeStruct((N, C_last, L_pad), x.dtype),
        grid=(N, n_tiles),
        in_specs=in_specs,
        out_specs=pl.BlockSpec((pl.Squeezed(), C_last, lane_tile),
                               lambda n, t: (n, 0, t)),
        compiler_params=pltpu.CompilerParams(
            dimension_semantics=("parallel", "parallel")),
        cost_estimate=pl.CostEstimate(
            flops=flops, transcendentals=0, bytes_accessed=bytes_accessed),
    )(*args)

    return yf if L_pad == L else yf[:, :, :L]


def init_params(key, num_inputs, num_channels, kernel_size):
    """Deterministic init matching PyTorch Conv1d default (uniform +-1/sqrt(fan_in))."""
    layers = []
    in_ch = num_inputs
    for out_ch in num_channels:
        key, k1, k2, k3, k4, k5, k6 = jax.random.split(key, 7)
        p = {}
        b1 = 1.0 / math.sqrt(in_ch * kernel_size)
        p["w1"] = jax.random.uniform(k1, (out_ch, in_ch, kernel_size),
                                     minval=-b1, maxval=b1, dtype=jnp.float32)
        p["b1"] = jax.random.uniform(k2, (out_ch,), minval=-b1, maxval=b1,
                                     dtype=jnp.float32)
        b2 = 1.0 / math.sqrt(out_ch * kernel_size)
        p["w2"] = jax.random.uniform(k3, (out_ch, out_ch, kernel_size),
                                     minval=-b2, maxval=b2, dtype=jnp.float32)
        p["b2"] = jax.random.uniform(k4, (out_ch,), minval=-b2, maxval=b2,
                                     dtype=jnp.float32)
        if in_ch != out_ch:
            bd = 1.0 / math.sqrt(in_ch)
            p["wd"] = jax.random.uniform(k5, (out_ch, in_ch, 1),
                                         minval=-bd, maxval=bd, dtype=jnp.float32)
            p["bd"] = jax.random.uniform(k6, (out_ch,), minval=-bd, maxval=bd,
                                         dtype=jnp.float32)
        layers.append(p)
        in_ch = out_ch
    return layers


# ---- pure-JAX reference (same bf16-operand / f32-accumulate arithmetic) ------
def _conv1d_ref(x, w, b, dilation, padding):
    y = lax.conv_general_dilated(
        x.astype(jnp.bfloat16), w.astype(jnp.bfloat16),
        window_strides=(1,), padding=[(padding, padding)],
        rhs_dilation=(dilation,), dimension_numbers=("NCH", "OIH", "NCH"),
        preferred_element_type=jnp.float32)
    return y + b[None, :, None]


def _tcn_ref(x, layer_params, kernel_size):
    for i, p in enumerate(layer_params):
        d = 2 ** i
        pad = (kernel_size - 1) * d
        h = jax.nn.relu(_conv1d_ref(x, p["w1"], p["b1"], d, pad))
        out = jax.nn.relu(_conv1d_ref(h, p["w2"], p["b2"], d, pad))
        res = _conv1d_ref(x, p["wd"], p["bd"], 1, 0) if "wd" in p else x
        x = jax.nn.relu(out + res)
    return x


if __name__ == "__main__":
    key = jax.random.PRNGKey(0)
    # Native (N, C, L) layout, lane_tile=512 -> grid (2, 1): two "parallel"
    # grid steps (keeps both v7x TensorCores busy; harmless on v5e/v6e).
    N, L = 2, 512
    num_inputs = 4
    num_channels = [8, 8]          # layer 0 uses a 1x1 downsample (4->8), layer 1 identity res
    kernel_size = 1                # only config for which the reference forward is valid

    key, kx, kp = jax.random.split(key, 3)
    x = jax.random.normal(kx, (N, num_inputs, L), dtype=jnp.float32)
    params = init_params(kp, num_inputs, num_channels, kernel_size)

    out = tcn_forward(x, params, kernel_size)
    out = jax.block_until_ready(out)

    ref = _tcn_ref(x, params, kernel_size)
    assert out.shape == ref.shape == (N, num_channels[-1], L)
    max_err = float(jnp.max(jnp.abs(out - ref)))
    assert jnp.allclose(out, ref, atol=1e-2, rtol=1e-2), max_err
    print("KERNEL_OK")
</pallas_src>

<mosaic_0001>
module attributes {stable_mosaic.version = 11 : i64} {
  func.func @kernel(%arg0: i32, %arg1: i32, %arg2: memref<1x4x512xf32, #tpu.memory_space<vmem>>, %arg3: memref<16x4xbf16, #tpu.memory_space<vmem>>, %arg4: memref<16x1xf32, #tpu.memory_space<vmem>>, %arg5: memref<8x8xbf16, #tpu.memory_space<vmem>>, %arg6: memref<8x1xf32, #tpu.memory_space<vmem>>, %arg7: memref<8x8xbf16, #tpu.memory_space<vmem>>, %arg8: memref<8x1xf32, #tpu.memory_space<vmem>>, %arg9: memref<8x8xbf16, #tpu.memory_space<vmem>>, %arg10: memref<8x1xf32, #tpu.memory_space<vmem>>, %arg11: memref<1x8x512xf32, #tpu.memory_space<vmem>>) attributes {dimension_semantics = [#tpu.dimension_semantics<parallel>, #tpu.dimension_semantics<parallel>], iteration_bounds = array<i64: 2, 1>, scalar_prefetch = 0 : i64, scratch_operands = 0 : i64, tpu.core_type = #tpu.core_type<tc>, window_params = [{transform_indices = @transform_0, window_bounds = array<i64: 1, 4, 512>}, {pipeline_mode = #tpu.pipeline_mode<synchronous>, transform_indices = @transform_1, window_bounds = array<i64: 16, 4>}, {pipeline_mode = #tpu.pipeline_mode<synchronous>, transform_indices = @transform_2, window_bounds = array<i64: 16, 1>}, {pipeline_mode = #tpu.pipeline_mode<synchronous>, transform_indices = @transform_3, window_bounds = array<i64: 8, 8>}, {pipeline_mode = #tpu.pipeline_mode<synchronous>, transform_indices = @transform_4, window_bounds = array<i64: 8, 1>}, {pipeline_mode = #tpu.pipeline_mode<synchronous>, transform_indices = @transform_5, window_bounds = array<i64: 8, 8>}, {pipeline_mode = #tpu.pipeline_mode<synchronous>, transform_indices = @transform_6, window_bounds = array<i64: 8, 1>}, {pipeline_mode = #tpu.pipeline_mode<synchronous>, transform_indices = @transform_7, window_bounds = array<i64: 8, 8>}, {pipeline_mode = #tpu.pipeline_mode<synchronous>, transform_indices = @transform_8, window_bounds = array<i64: 8, 1>}, {transform_indices = @transform_9, window_bounds = array<i64: 1, 8, 512>}]} {
    %c0 = arith.constant 0 : index
    %c0_0 = arith.constant 0 : index
    %c0_1 = arith.constant 0 : index
    %0 = vector.load %arg2[%c0, %c0_0, %c0_1] : memref<1x4x512xf32, #tpu.memory_space<vmem>>, vector<1x4x512xf32>
    %1 = vector.shape_cast %0 : vector<1x4x512xf32> to vector<4x512xf32>
    %2 = arith.truncf %1 : vector<4x512xf32> to vector<4x512xbf16>
    %c0_2 = arith.constant 0 : index
    %c0_3 = arith.constant 0 : index
    %3 = vector.load %arg3[%c0_2, %c0_3] : memref<16x4xbf16, #tpu.memory_space<vmem>>, vector<16x4xbf16>
    %cst = arith.constant dense<0.000000e+00> : vector<16x512xf32>
    %4 = tpu.matmul %3, %2, %cst {dimension_numbers = #tpu.dot_dimension_numbers<[1], [0], [0], [1], [0, 0, 1, 1], [], []>} : vector<16x4xbf16>, vector<4x512xbf16>, vector<16x512xf32> -> vector<16x512xf32>
    %c0_4 = arith.constant 0 : index
    %c0_5 = arith.constant 0 : index
    %5 = vector.load %arg4[%c0_4, %c0_5] : memref<16x1xf32, #tpu.memory_space<vmem>>, vector<16x1xf32>
    %6 = vector.broadcast %5 : vector<16x1xf32> to vector<16x512xf32>
    %7 = arith.addf %4, %6 : vector<16x512xf32>
    %8 = vector.extract_strided_slice %7 {offsets = [0, 0], sizes = [8, 512], strides = [1, 1]} : vector<16x512xf32> to vector<8x512xf32>
    %cst_6 = arith.constant 0.000000e+00 : f32
    %9 = vector.broadcast %cst_6 : f32 to vector<8x512xf32>
    %10 = arith.maximumf %8, %9 : vector<8x512xf32>
    %11 = vector.extract_strided_slice %7 {offsets = [8, 0], sizes = [8, 512], strides = [1, 1]} : vector<16x512xf32> to vector<8x512xf32>
    %c0_7 = arith.constant 0 : index
    %c0_8 = arith.constant 0 : index
    %12 = vector.load %arg5[%c0_7, %c0_8] : memref<8x8xbf16, #tpu.memory_space<vmem>>, vector<8x8xbf16>
    %13 = arith.truncf %10 : vector<8x512xf32> to vector<8x512xbf16>
    %cst_9 = arith.constant dense<0.000000e+00> : vector<8x512xf32>
    %14 = tpu.matmul %12, %13, %cst_9 {dimension_numbers = #tpu.dot_dimension_numbers<[1], [0], [0], [1], [0, 0, 1, 1], [], []>} : vector<8x8xbf16>, vector<8x512xbf16>, vector<8x512xf32> -> vector<8x512xf32>
    %c0_10 = arith.constant 0 : index
    %c0_11 = arith.constant 0 : index
    %15 = vector.load %arg6[%c0_10, %c0_11] : memref<8x1xf32, #tpu.memory_space<vmem>>, vector<8x1xf32>
    %16 = vector.broadcast %15 : vector<8x1xf32> to vector<8x512xf32>
    %17 = arith.addf %14, %16 : vector<8x512xf32>
    %cst_12 = arith.constant 0.000000e+00 : f32
    %18 = vector.broadcast %cst_12 : f32 to vector<8x512xf32>
    %19 = arith.maximumf %17, %18 : vector<8x512xf32>
    %20 = arith.addf %19, %11 : vector<8x512xf32>
    %cst_13 = arith.constant 0.000000e+00 : f32
    %21 = vector.broadcast %cst_13 : f32 to vector<8x512xf32>
    %22 = arith.maximumf %20, %21 : vector<8x512xf32>
    %23 = arith.truncf %22 : vector<8x512xf32> to vector<8x512xbf16>
    %c0_14 = arith.constant 0 : index
    %c0_15 = arith.constant 0 : index
    %24 = vector.load %arg7[%c0_14, %c0_15] : memref<8x8xbf16, #tpu.memory_space<vmem>>, vector<8x8xbf16>
    %cst_16 = arith.constant dense<0.000000e+00> : vector<8x512xf32>
    %25 = tpu.matmul %24, %23, %cst_16 {dimension_numbers = #tpu.dot_dimension_numbers<[1], [0], [0], [1], [0, 0, 1, 1], [], []>} : vector<8x8xbf16>, vector<8x512xbf16>, vector<8x512xf32> -> vector<8x512xf32>
    %c0_17 = arith.constant 0 : index
    %c0_18 = arith.constant 0 : index
    %26 = vector.load %arg8[%c0_17, %c0_18] : memref<8x1xf32, #tpu.memory_space<vmem>>, vector<8x1xf32>
    %27 = vector.broadcast %26 : vector<8x1xf32> to vector<8x512xf32>
    %28 = arith.addf %25, %27 : vector<8x512xf32>
    %cst_19 = arith.constant 0.000000e+00 : f32
    %29 = vector.broadcast %cst_19 : f32 to vector<8x512xf32>
    %30 = arith.maximumf %28, %29 : vector<8x512xf32>
    %c0_20 = arith.constant 0 : index
    %c0_21 = arith.constant 0 : index
    %31 = vector.load %arg9[%c0_20, %c0_21] : memref<8x8xbf16, #tpu.memory_space<vmem>>, vector<8x8xbf16>
    %32 = arith.truncf %30 : vector<8x512xf32> to vector<8x512xbf16>
    %cst_22 = arith.constant dense<0.000000e+00> : vector<8x512xf32>
    %33 = tpu.matmul %31, %32, %cst_22 {dimension_numbers = #tpu.dot_dimension_numbers<[1], [0], [0], [1], [0, 0, 1, 1], [], []>} : vector<8x8xbf16>, vector<8x512xbf16>, vector<8x512xf32> -> vector<8x512xf32>
    %c0_23 = arith.constant 0 : index
    %c0_24 = arith.constant 0 : index
    %34 = vector.load %arg10[%c0_23, %c0_24] : memref<8x1xf32, #tpu.memory_space<vmem>>, vector<8x1xf32>
    %35 = vector.broadcast %34 : vector<8x1xf32> to vector<8x512xf32>
    %36 = arith.addf %33, %35 : vector<8x512xf32>
    %cst_25 = arith.constant 0.000000e+00 : f32
    %37 = vector.broadcast %cst_25 : f32 to vector<8x512xf32>
    %38 = arith.maximumf %36, %37 : vector<8x512xf32>
    %39 = arith.addf %38, %22 : vector<8x512xf32>
    %cst_26 = arith.constant 0.000000e+00 : f32
    %40 = vector.broadcast %cst_26 : f32 to vector<8x512xf32>
    %41 = arith.maximumf %39, %40 : vector<8x512xf32>
    %c0_27 = arith.constant 0 : index
    %c0_28 = arith.constant 0 : index
    %c0_29 = arith.constant 0 : index
    %42 = vector.load %arg11[%c0_27, %c0_28, %c0_29] : memref<1x8x512xf32, #tpu.memory_space<vmem>>, vector<1x8x512xf32>
    %43 = vector.shape_cast %42 : vector<1x8x512xf32> to vector<8x512xf32>
    %44 = vector.shape_cast %41 : vector<8x512xf32> to vector<1x8x512xf32>
    tpu.vector_store %arg11[%c0_27, %c0_28, %c0_29], %44 {strides = array<i32>} : memref<1x8x512xf32, #tpu.memory_space<vmem>>, vector<1x8x512xf32>,
    return
  }
  func.func @transform_0(%arg0: i32, %arg1: i32) -> (i32, i32, i32) {
    %c0_i32 = arith.constant 0 : i32
    %c0_i32_0 = arith.constant 0 : i32
    return %arg0, %c0_i32, %arg1 : i32, i32, i32
  }
  func.func @transform_1(%arg0: i32, %arg1: i32) -> (i32, i32) {
    %c0_i32 = arith.constant 0 : i32
    %c0_i32_0 = arith.constant 0 : i32
    %c0_i32_1 = arith.constant 0 : i32
    return %c0_i32, %c0_i32_0 : i32, i32
  }
  func.func @transform_2(%arg0: i32, %arg1: i32) -> (i32, i32) {
    %c0_i32 = arith.constant 0 : i32
    %c0_i32_0 = arith.constant 0 : i32
    %c0_i32_1 = arith.constant 0 : i32
    return %c0_i32, %c0_i32_0 : i32, i32
  }
  func.func @transform_3(%arg0: i32, %arg1: i32) -> (i32, i32) {
    %c0_i32 = arith.constant 0 : i32
    %c0_i32_0 = arith.constant 0 : i32
    %c0_i32_1 = arith.constant 0 : i32
    return %c0_i32, %c0_i32_0 : i32, i32
  }
  func.func @transform_4(%arg0: i32, %arg1: i32) -> (i32, i32) {
    %c0_i32 = arith.constant 0 : i32
    %c0_i32_0 = arith.constant 0 : i32
    %c0_i32_1 = arith.constant 0 : i32
    return %c0_i32, %c0_i32_0 : i32, i32
  }
  func.func @transform_5(%arg0: i32, %arg1: i32) -> (i32, i32) {
    %c0_i32 = arith.constant 0 : i32
    %c0_i32_0 = arith.constant 0 : i32
    %c0_i32_1 = arith.constant 0 : i32
    return %c0_i32, %c0_i32_0 : i32, i32
  }
  func.func @transform_6(%arg0: i32, %arg1: i32) -> (i32, i32) {
    %c0_i32 = arith.constant 0 : i32
    %c0_i32_0 = arith.constant 0 : i32
    %c0_i32_1 = arith.constant 0 : i32
    return %c0_i32, %c0_i32_0 : i32, i32
  }
  func.func @transform_7(%arg0: i32, %arg1: i32) -> (i32, i32) {
    %c0_i32 = arith.constant 0 : i32
    %c0_i32_0 = arith.constant 0 : i32
    %c0_i32_1 = arith.constant 0 : i32
    return %c0_i32, %c0_i32_0 : i32, i32
  }
  func.func @transform_8(%arg0: i32, %arg1: i32) -> (i32, i32) {
    %c0_i32 = arith.constant 0 : i32
    %c0_i32_0 = arith.constant 0 : i32
    %c0_i32_1 = arith.constant 0 : i32
    return %c0_i32, %c0_i32_0 : i32, i32
  }
  func.func @transform_9(%arg0: i32, %arg1: i32) -> (i32, i32, i32) {
    %c0_i32 = arith.constant 0 : i32
    %c0_i32_0 = arith.constant 0 : i32
    return %arg0, %c0_i32, %arg1 : i32, i32, i32
  }
}

</mosaic_0001>

<llo_original>
// kernel: tpu_custom_call.1
$region0: #{tpu_custom_call.1}
  #allocation0 [shape = 'u32[]', space=smem, size = 0x4, offset = 0x4, fixed_abs, tag = 'smem constant byte address 0x4 - core index']
  #allocation1 [shape = 'u32[144,128]{1,0:T(1,128)}', space=vmem, size = 0x12000, scoped, tag = 'internal scratch']
  %s0 = inlined_call_operand.vmem [shape: f32[2,4,512], index: 0, kind: input, shape index: {}]
  %s1 = inlined_call_operand.vmem [shape: bf16[16,4], index: 1, kind: input, shape index: {}]
  %s2 = inlined_call_operand.vmem [shape: f32[16,1], index: 2, kind: input, shape index: {}]
  %s3 = inlined_call_operand.vmem [shape: bf16[8,8], index: 3, kind: input, shape index: {}]
  %s4 = inlined_call_operand.vmem [shape: f32[8,1], index: 4, kind: input, shape index: {}]
  %s5 = inlined_call_operand.vmem [shape: bf16[8,8], index: 5, kind: input, shape index: {}]
  %s6 = inlined_call_operand.vmem [shape: f32[8,1], index: 6, kind: input, shape index: {}]
  %s7 = inlined_call_operand.vmem [shape: bf16[8,8], index: 7, kind: input, shape index: {}]
  %s8 = inlined_call_operand.vmem [shape: f32[8,1], index: 8, kind: input, shape index: {}]
  %s9 = inlined_call_operand.hbm [shape: f32[2,8,512], index: 9, kind: output, shape index: {}]
  %s10 = sld [smem:[#allocation0]]
  $region69: #{tpu_custom_call.1} parent=0
    _
  %s12 = ssub.s32 1, %s10
  %s13 = scalar_select 0, %s12, %s10
  $region1: #{tpu_custom_call.1} parent=0
    #allocation2 [shape = 'u8[32768]{0}', space=vmem, size = 0x8000, scoped, tag = 'output window, operand 0']
    #allocation3 [shape = 's32[2]{0}', space=sflag, size = 0x8, scoped, tag = 'scoped memory for tpu_custom_call.1']
    %14 = vsyncpa [#allocation3], 0
    %s15 = scalar_lea.sflag [#allocation3], 1
    %16 = vsyncpa %s15, 0
    loop: start=0, step=1, limit=4
    $region2: #{tpu_custom_call.1} parent=1 // loop_pre_header
      _
    $region3: #{tpu_custom_call.1} parent=1 // loop_header
      %s18 = sphi 0, %s22
      %p19 = scmp.ge.s32.totalorder %s18, 4
      %s25 = sphi 0, %s37
      %s26 = sphi 0, %s33
      %s27 = sphi 0, %s25
      %s28 = sphi 0, %s26
      %s29 = sphi 0, %s27
      %s30 = sphi 0, %s28
      %s42 = sphi 0, %s44
      %s45 = sphi 0, %s42
      %s46 = sphi 0, %s45
      %s62 = sphi 0, %s46
      %s66 = sphi 0, %s66
      %s68 = sphi 0, %s66
      %s69 = sphi 0, %s68
      %s83 = sphi 0, %s69
      %s87 = sphi 0, %s87
      %s89 = sphi 0, %s87
      %s90 = sphi 0, %s89
      %s104 = sphi 0, %s90
      %s108 = sphi 0, %s108
      %s110 = sphi 0, %s108
      %s111 = sphi 0, %s110
      %s125 = sphi 0, %s111
      %s129 = sphi 0, %s129
      %s131 = sphi 0, %s129
      %s132 = sphi 0, %s131
      %s146 = sphi 0, %s132
      %s150 = sphi 0, %s150
      %s152 = sphi 0, %s150
      %s153 = sphi 0, %s152
      %s167 = sphi 0, %s153
      %s171 = sphi 0, %s171
      %s173 = sphi 0, %s171
      %s174 = sphi 0, %s173
      %s188 = sphi 0, %s174
      %s192 = sphi 0, %s192
      %s194 = sphi 0, %s192
      %s195 = sphi 0, %s194
      %s209 = sphi 0, %s195
      %s213 = sphi 0, %s213
      %s215 = sphi 0, %s213
      %s216 = sphi 0, %s215
      %s230 = sphi 0, %s216
      %s238 = sphi 0, %s240
      %s241 = sphi 0, %s238
      %s242 = sphi 0, %s241
      %s258 = sphi 0, %s242
    $region4: #{tpu_custom_call.1} parent=1 // loop_header_branch
      %21 = sbr.rel (%p19) target = $region8
    $region5: #{tpu_custom_call.1} parent=1 // loop_body
      %s23 = ssub.s32 %s18, 1
      %s24 = ssub.s32 %s18, 2
      %s31 = sadd.s32 1, %s26
      %p32 = scmp.ge.s32.totalorder %s31, 1
      %s33 = scalar_select %p32, 0, %s31
      %s34 = sadd.s32 1, %s25
      %s35 = scalar_select %p32, %s34, %s25
      %p36 = scmp.ge.s32.totalorder %s35, 2
      %s37 = scalar_select %p36, 0, %s35
      %s38 = ssub.s32 %s25, %s37
      %s39 = ssub.s32 %s26, %s33
      %s40 = sor.u32 %s38, %s39
      %p41 = scmp.eq.s32.totalorder %s40, 0
      %s43 = sadd.s32 %s42, 1
      %s44 = scalar_select %p41, %s42, %s43
      %p47 = pneg %p41
      %p48 = scmp.eq.s32.totalorder %s18, 1
      %p49 = por %p47, %p48
      %p50 = scmp.ne.s32.totalorder %s42, %s45
      %p51 = scmp.eq.s32.totalorder %s18, 0
      %p52 = por %p50, %p51
      %p53 = scmp.ne.s32.totalorder %s42, %s45
      %p54 = scmp.eq.s32.totalorder %s23, 1
      %p55 = por %p53, %p54
      %p56 = scmp.ne.s32.totalorder %s45, %s46
      %p57 = scmp.eq.s32.totalorder %s23, 0
      %p58 = por %p56, %p57
      %p59 = scmp.ne.s32.totalorder %s45, %s46
      %p60 = scmp.eq.s32.totalorder %s24, 1
      %p61 = por %p59, %p60
      %p63 = scmp.ne.s32.totalorder %s46, %s62
      %p64 = scmp.eq.s32.totalorder %s24, 0
      %p65 = por %p63, %p64
      %s67 = sadd.s32 %s66, 1
      %p70 = scmp.eq.s32.totalorder %s18, 1
      %p71 = scmp.ne.s32.totalorder %s66, %s68
      %p72 = scmp.eq.s32.totalorder %s18, 0
      %p73 = por %p71, %p72
      %p74 = scmp.ne.s32.totalorder %s66, %s68
      %p75 = scmp.eq.s32.totalorder %s23, 1
      %p76 = por %p74, %p75
      %p77 = scmp.ne.s32.totalorder %s68, %s69
      %p78 = scmp.eq.s32.totalorder %s23, 0
      %p79 = por %p77, %p78
      %p80 = scmp.ne.s32.totalorder %s68, %s69
      %p81 = scmp.eq.s32.totalorder %s24, 1
      %p82 = por %p80, %p81
      %p84 = scmp.ne.s32.totalorder %s69, %s83
      %p85 = scmp.eq.s32.totalorder %s24, 0
      %p86 = por %p84, %p85
      %s88 = sadd.s32 %s87, 1
      %p91 = scmp.eq.s32.totalorder %s18, 1
      %p92 = scmp.ne.s32.totalorder %s87, %s89
      %p93 = scmp.eq.s32.totalorder %s18, 0
      %p94 = por %p92, %p93
      %p95 = scmp.ne.s32.totalorder %s87, %s89
      %p96 = scmp.eq.s32.totalorder %s23, 1
      %p97 = por %p95, %p96
      %p98 = scmp.ne.s32.totalorder %s89, %s90
      %p99 = scmp.eq.s32.totalorder %s23, 0
      %p100 = por %p98, %p99
      %p101 = scmp.ne.s32.totalorder %s89, %s90
      %p102 = scmp.eq.s32.totalorder %s24, 1
      %p103 = por %p101, %p102
      %p105 = scmp.ne.s32.totalorder %s90, %s104
      %p106 = scmp.eq.s32.totalorder %s24, 0
      %p107 = por %p105, %p106
      %s109 = sadd.s32 %s108, 1
      %p112 = scmp.eq.s32.totalorder %s18, 1
      %p113 = scmp.ne.s32.totalorder %s108, %s110
      %p114 = scmp.eq.s32.totalorder %s18, 0
      %p115 = por %p113, %p114
      %p116 = scmp.ne.s32.totalorder %s108, %s110
      %p117 = scmp.eq.s32.totalorder %s23, 1
      %p118 = por %p116, %p117
      %p119 = scmp.ne.s32.totalorder %s110, %s111
      %p120 = scmp.eq.s32.totalorder %s23, 0
      %p121 = por %p119, %p120
      %p122 = scmp.ne.s32.totalorder %s110, %s111
      %p123 = scmp.eq.s32.totalorder %s24, 1
      %p124 = por %p122, %p123
      %p126 = scmp.ne.s32.totalorder %s111, %s125
      %p127 = scmp.eq.s32.totalorder %s24, 0
      %p128 = por %p126, %p127
      %s130 = sadd.s32 %s129, 1
      %p133 = scmp.eq.s32.totalorder %s18, 1
      %p134 = scmp.ne.s32.totalorder %s129, %s131
      %p135 = scmp.eq.s32.totalorder %s18, 0
      %p136 = por %p134, %p135
      %p137 = scmp.ne.s32.totalorder %s129, %s131
      %p138 = scmp.eq.s32.totalorder %s23, 1
      %p139 = por %p137, %p138
      %p140 = scmp.ne.s32.totalorder %s131, %s132
      %p141 = scmp.eq.s32.totalorder %s23, 0
      %p142 = por %p140, %p141
      %p143 = scmp.ne.s32.totalorder %s131, %s132
      %p144 = scmp.eq.s32.totalorder %s24, 1
      %p145 = por %p143, %p144
      %p147 = scmp.ne.s32.totalorder %s132, %s146
      %p148 = scmp.eq.s32.totalorder %s24, 0
      %p149 = por %p147, %p148
      %s151 = sadd.s32 %s150, 1
      %p154 = scmp.eq.s32.totalorder %s18, 1
      %p155 = scmp.ne.s32.totalorder %s150, %s152
      %p156 = scmp.eq.s32.totalorder %s18, 0
      %p157 = por %p155, %p156
      %p158 = scmp.ne.s32.totalorder %s150, %s152
      %p159 = scmp.eq.s32.totalorder %s23, 1
      %p160 = por %p158, %p159
      %p161 = scmp.ne.s32.totalorder %s152, %s153
      %p162 = scmp.eq.s32.totalorder %s23, 0
      %p163 = por %p161, %p162
      %p164 = scmp.ne.s32.totalorder %s152, %s153
      %p165 = scmp.eq.s32.totalorder %s24, 1
      %p166 = por %p164, %p165
      %p168 = scmp.ne.s32.totalorder %s153, %s167
      %p169 = scmp.eq.s32.totalorder %s24, 0
      %p170 = por %p168, %p169
      %s172 = sadd.s32 %s171, 1
      %p175 = scmp.eq.s32.totalorder %s18, 1
      %p176 = scmp.ne.s32.totalorder %s171, %s173
      %p177 = scmp.eq.s32.totalorder %s18, 0
      %p178 = por %p176, %p177
      %p179 = scmp.ne.s32.totalorder %s171, %s173
      %p180 = scmp.eq.s32.totalorder %s23, 1
      %p181 = por %p179, %p180
      %p182 = scmp.ne.s32.totalorder %s173, %s174
      %p183 = scmp.eq.s32.totalorder %s23, 0
      %p184 = por %p182, %p183
      %p185 = scmp.ne.s32.totalorder %s173, %s174
      %p186 = scmp.eq.s32.totalorder %s24, 1
      %p187 = por %p185, %p186
      %p189 = scmp.ne.s32.totalorder %s174, %s188
      %p190 = scmp.eq.s32.totalorder %s24, 0
      %p191 = por %p189, %p190
      %s193 = sadd.s32 %s192, 1
      %p196 = scmp.eq.s32.totalorder %s18, 1
      %p197 = scmp.ne.s32.totalorder %s192, %s194
      %p198 = scmp.eq.s32.totalorder %s18, 0
      %p199 = por %p197, %p198
      %p200 = scmp.ne.s32.totalorder %s192, %s194
      %p201 = scmp.eq.s32.totalorder %s23, 1
      %p202 = por %p200, %p201
      %p203 = scmp.ne.s32.totalorder %s194, %s195
      %p204 = scmp.eq.s32.totalorder %s23, 0
      %p205 = por %p203, %p204
      %p206 = scmp.ne.s32.totalorder %s194, %s195
      %p207 = scmp.eq.s32.totalorder %s24, 1
      %p208 = por %p206, %p207
      %p210 = scmp.ne.s32.totalorder %s195, %s209
      %p211 = scmp.eq.s32.totalorder %s24, 0
      %p212 = por %p210, %p211
      %s214 = sadd.s32 %s213, 1
      %p217 = scmp.eq.s32.totalorder %s18, 1
      %p218 = scmp.ne.s32.totalorder %s213, %s215
      %p219 = scmp.eq.s32.totalorder %s18, 0
      %p220 = por %p218, %p219
      %p221 = scmp.ne.s32.totalorder %s213, %s215
      %p222 = scmp.eq.s32.totalorder %s23, 1
      %p223 = por %p221, %p222
      %p224 = scmp.ne.s32.totalorder %s215, %s216
      %p225 = scmp.eq.s32.totalorder %s23, 0
      %p226 = por %p224, %p225
      %p227 = scmp.ne.s32.totalorder %s215, %s216
      %p228 = scmp.eq.s32.totalorder %s24, 1
      %p229 = por %p227, %p228
      %p231 = scmp.ne.s32.totalorder %s216, %s230
      %p232 = scmp.eq.s32.totalorder %s24, 0
      %p233 = por %p231, %p232
      %s234 = ssub.s32 %s25, %s37
      %s235 = ssub.s32 %s26, %s33
      %s236 = sor.u32 %s234, %s235
      %p237 = scmp.eq.s32.totalorder %s236, 0
      %s239 = sadd.s32 %s238, 1
      %s240 = scalar_select %p237, %s238, %s239
      %p243 = pneg %p237
      %p244 = scmp.eq.s32.totalorder %s18, 1
      %p245 = por %p243, %p244
      %p246 = scmp.ne.s32.totalorder %s238, %s241
      %p247 = scmp.eq.s32.totalorder %s18, 0
      %p248 = por %p246, %p247
      %p249 = scmp.ne.s32.totalorder %s238, %s241
      %p250 = scmp.eq.s32.totalorder %s23, 1
      %p251 = por %p249, %p250
      %p252 = scmp.ne.s32.totalorder %s241, %s242
      %p253 = scmp.eq.s32.totalorder %s23, 0
      %p254 = por %p252, %p253
      %p255 = scmp.ne.s32.totalorder %s241, %s242
      %p256 = scmp.eq.s32.totalorder %s24, 1
      %p257 = por %p255, %p256
      %p259 = scmp.ne.s32.totalorder %s242, %s258
      %p260 = scmp.eq.s32.totalorder %s24, 0
      %p261 = por %p259, %p260
      %p262 = scmp.le.s32.totalorder 1, %s18
      %p263 = scmp.lt.s32.totalorder %s18, 3
      %p264 = pnand %p262, %p263
      %p265 = pneg %p264
      // Predicated region
      $region9: #{tpu_custom_call.1} parent=5 // pred_check
        _
      $region10: #{tpu_custom_call.1} parent=5 // pred_check_branch
        %267 = sbr.rel (%p264) target = $region12
      $region11: #{tpu_custom_call.1} parent=5 // pred_region
        %s268 = ssub.s32 %s18, 1
        // Predicated region
        $region13: #{tpu_custom_call.1} parent=11 // pred_check
          %p269 = pneg %p79
        $region14: #{tpu_custom_call.1} parent=11 // pred_check_branch
          %271 = sbr.rel (%p269) target = $region16
        $region15: #{tpu_custom_call.1} parent=11 // pred_region
          _
        $region16: #{tpu_custom_call.1} parent=11 // pred_fallthru
          _
        // Predicated region
        $region17: #{tpu_custom_call.1} parent=11 // pred_check
          %p272 = pneg %p100
        $region18: #{tpu_custom_call.1} parent=11 // pred_check_branch
          %274 = sbr.rel (%p272) target = $region20
        $region19: #{tpu_custom_call.1} parent=11 // pred_region
          _
        $region20: #{tpu_custom_call.1} parent=11 // pred_fallthru
          _
        // Predicated region
        $region21: #{tpu_custom_call.1} parent=11 // pred_check
          %p275 = pneg %p121
        $region22: #{tpu_custom_call.1} parent=11 // pred_check_branch
          %277 = sbr.rel (%p275) target = $region24
        $region23: #{tpu_custom_call.1} parent=11 // pred_region
          _
        $region24: #{tpu_custom_call.1} parent=11 // pred_fallthru
          _
        // Predicated region
        $region25: #{tpu_custom_call.1} parent=11 // pred_check
          %p278 = pneg %p142
        $region26: #{tpu_custom_call.1} parent=11 // pred_check_branch
          %280 = sbr.rel (%p278) target = $region28
        $region27: #{tpu_custom_call.1} parent=11 // pred_region
          _
        $region28: #{tpu_custom_call.1} parent=11 // pred_fallthru
          _
        // Predicated region
        $region29: #{tpu_custom_call.1} parent=11 // pred_check
          %p281 = pneg %p163
        $region30: #{tpu_custom_call.1} parent=11 // pred_check_branch
          %283 = sbr.rel (%p281) target = $region32
        $region31: #{tpu_custom_call.1} parent=11 // pred_region
          _
        $region32: #{tpu_custom_call.1} parent=11 // pred_fallthru
          _
        // Predicated region
        $region33: #{tpu_custom_call.1} parent=11 // pred_check
          %p284 = pneg %p184
        $region34: #{tpu_custom_call.1} parent=11 // pred_check_branch
          %286 = sbr.rel (%p284) target = $region36
        $region35: #{tpu_custom_call.1} parent=11 // pred_region
          _
        $region36: #{tpu_custom_call.1} parent=11 // pred_fallthru
          _
        // Predicated region
        $region37: #{tpu_custom_call.1} parent=11 // pred_check
          %p287 = pneg %p205
        $region38: #{tpu_custom_call.1} parent=11 // pred_check_branch
          %289 = sbr.rel (%p287) target = $region40
        $region39: #{tpu_custom_call.1} parent=11 // pred_region
          _
        $region40: #{tpu_custom_call.1} parent=11 // pred_fallthru
          _
        // Predicated region
        $region41: #{tpu_custom_call.1} parent=11 // pred_check
          %p290 = pneg %p226
        $region42: #{tpu_custom_call.1} parent=11 // pred_check_branch
          %292 = sbr.rel (%p290) target = $region44
        $region43: #{tpu_custom_call.1} parent=11 // pred_region
          _
        $region44: #{tpu_custom_call.1} parent=11 // pred_fallthru
          _
      $region12: #{tpu_custom_call.1} parent=5 // pred_fallthru
        _
      %p293 = scmp.lt.s32.totalorder %s18, 2
      // Predicated region
      $region45: #{tpu_custom_call.1} parent=5 // pred_check
        %p294 = pneg %p293
      $region46: #{tpu_custom_call.1} parent=5 // pred_check_branch
        %296 = sbr.rel (%p294) target = $region48
      $region47: #{tpu_custom_call.1} parent=5 // pred_region
        // Predicated region
        $region49: #{tpu_custom_call.1} parent=47 // pred_check
          %p297 = pneg %p52
        $region50: #{tpu_custom_call.1} parent=47 // pred_check_branch
          %299 = sbr.rel (%p297) target = $region52
        $region51: #{tpu_custom_call.1} parent=47 // pred_region
          %s300 = smul.u32 4, %s26
          %p301 = scmp.lt.s32.totalorder %s25, 1
          %s302 = scalar_select %p301, %s25, 1
          %p303 = scmp.lt.s32.totalorder %s300, 3
          %s304 = scalar_select %p303, %s300, 3
          %s305 = smul.addr %s302, 4
          %s306 = sadd.s32 %s304, %s305
          %s307 = smul.addr %s306, 4
          %s308 = scalar_lea.vmem %s0, %s307
          %s309 = smul.u32 4, %s26
        $region52: #{tpu_custom_call.1} parent=47 // pred_fallthru
          _
      $region48: #{tpu_custom_call.1} parent=5 // pred_fallthru
        _
      %p310 = scmp.le.s32.totalorder 1, %s18
      %p311 = scmp.lt.s32.totalorder %s18, 3
      %p312 = pnand %p310, %p311
      %p313 = pneg %p312
      // Predicated region
      $region53: #{tpu_custom_call.1} parent=5 // pred_check
        _
      $region54: #{tpu_custom_call.1} parent=5 // pred_check_branch
        %315 = sbr.rel (%p312) target = $region56
      $region55: #{tpu_custom_call.1} parent=5 // pred_region
        %s316 = ssub.s32 %s18, 1
        %s317 = smul.u32 4, %s28
        %p318 = scmp.lt.s32.totalorder %s27, 1
        %s319 = scalar_select %p318, %s27, 1
        %p320 = scmp.lt.s32.totalorder %s317, 3
        %s321 = scalar_select %p320, %s317, 3
        %s322 = smul.addr %s319, 4
        %s323 = sadd.s32 %s321, %s322
        %s324 = smul.addr %s323, 4
        %s325 = scalar_lea.vmem %s0, %s324
        %p326 = pneg %p58
        %p327 = pneg %p55
        %p328 = pneg %p79
        %p329 = pneg %p76
        %p330 = pneg %p100
        %p331 = pneg %p97
        %p332 = pneg %p121
        %p333 = pneg %p118
        %p334 = pneg %p142
        %p335 = pneg %p139
        %p336 = pneg %p163
        %p337 = pneg %p160
        %p338 = pneg %p184
        %p339 = pneg %p181
        %p340 = pneg %p205
        %p341 = pneg %p202
        %p342 = pneg %p226
        %p343 = pneg %p223
        %p344 = pneg %p254
        %p345 = pneg %p251
        %s346 = sand.u32 %s241, 1
        %s347 = scalar_lea.sflag [#allocation3], %s346
        %s348 = sand.u32 %s241, 1
        %s349 = smul.addr %s348, 32
        %s350 = scalar_lea.vmem [#allocation2], %s349
        %s351 = smul.u32 4, %s28
        %p352 = scmp.lt.s32.totalorder %s27, 1
        %s353 = scalar_select %p352, %s27, 1
        %p354 = scmp.lt.s32.totalorder %s351, 3
        %s355 = scalar_select %p354, %s351, 3
        %s356 = smul.addr %s353, 4
        %s357 = sadd.s32 %s355, %s356
        %s358 = smul.addr %s357, 4
        %s359 = scalar_lea.vmem %s0, %s358
        %s360 = smul.u32 4, %s28
        %s361 = smul.u32 4, %s28
        %v363 = vld [vmem:[%s359] sm:$0xff]
        %v364 = vld [vmem:[%s359 + $0x8] sm:$0xff]
        %v367 = vcombine.high %v363, %v363
        %v368 = vcombine.high %v364, %v364
        %v371 = vpack.c.bf16 %v363, %v363
        %v372 = vpack.c.bf16 %v367, %v367
        %v373 = vpack.c.bf16 %v364, %v364
        %v374 = vpack.c.bf16 %v368, %v368
        %v375 = vld [vmem:[%s1] sm:$0xf]
        %v376 = vld [vmem:[%s1 + $0x4] sm:$0xf]
        %v377 = vld [vmem:[%s2] sm:$0xff]
        %v378 = vld [vmem:[%s2 + $0x8] sm:$0xff]
        %380 = vset.pattern.permute.xlu0 0
        %381 = vperm.xlu0 %380, %v377
        %v382 = vpop.permute.xlu0 %381
        %385 = vset.pattern.permute.xlu0 0
        %386 = vperm.xlu0 %385, %v378
        %v387 = vpop.permute.xlu0 %386
        %v391 = vunpack.c.l.b16 %v375
        %v392 = vunpack.c.l.b16 %v376
        %v393 = vpack.c.b16 %v392, %v391
        %vm394 = vcmask 31744
        %v396 = vsel %vm394, %v393, 0
        %vm398 = vcmask 1041408
        %v400 = vsel %vm398, %v371, 0
        %v403 = vsel %vm398, %v372, 0
        %v406 = vsel %vm398, %v373, 0
        %v409 = vsel %vm398, %v374, 0
        %411 = vmatprep.subr.bf16.mxu0 0
        %412 = vmatpush1.bf16.msra.mxu0 0
        %413 = vmatprep.subr.bf16.mxu0 0
        %414 = vmatpush1.bf16.msra.mxu0 0
        %415 = vmatprep.subr.bf16.mxu0 0
        %416 = vmatpush1.bf16.msra.mxu0 0
        %417 = vmatprep.subr.bf16.mxu0 0
        %418 = vmatpush1.bf16.msra.mxu0 0
        %419 = vmatprep.subr.bf16.mxu0 0
        %420 = vmatpush1.bf16.msra.mxu0 0
        %421 = vmatprep.subr.bf16.mxu0 0
        %422 = vmatpush1.bf16.msra.mxu0 0
        %423 = vmatprep.subr.bf16.mxu0 0
        %424 = vmatpush1.bf16.msra.mxu0 0
        %425 = vmatprep.subr.bf16.mxu0 %v403
        %426 = vmatpush1.bf16.msra.mxu0 %v400
        %427 = vmatprep.subr.bf16.mxu0 0
        %428 = vmatpush2.bf16.msra.mxu0 0
        %429 = vmatprep.subr.bf16.mxu0 0
        %430 = vmatpush2.bf16.msra.mxu0 0
        %431 = vmatprep.subr.bf16.mxu0 0
        %432 = vmatpush2.bf16.msra.mxu0 0
        %433 = vmatprep.subr.bf16.mxu0 0
        %434 = vmatpush2.bf16.msra.mxu0 0
        %435 = vmatprep.subr.bf16.mxu0 0
        %436 = vmatpush2.bf16.msra.mxu0 0
        %437 = vmatprep.subr.bf16.mxu0 0
        %438 = vmatpush2.bf16.msra.mxu0 0
        %439 = vmatprep.subr.bf16.mxu0 0
        %440 = vmatpush2.bf16.msra.mxu0 0
        %441 = vmatprep.subr.bf16.mxu0 0
        %442 = vmatpush2.bf16.msra.mxu0 0
        %443 = vmatprep.mubr.bf16.mxu0 0
        %444 = vmatmul.mubr.bf16.gmra.mxu0 %v396
        %v445 = vpop.f32.mrf.mxu0
        %v446 = vadd.f32 %v382, %v445
        %v447 = vpop.f32.mrf.mxu0
        %v448 = vadd.f32 %v382, %v447
        %v449 = vpop.f32.mrf.mxu0
        %v450 = vadd.f32 %v387, %v449
        %v451 = vpop.f32.mrf.mxu0
        %v452 = vadd.f32 %v387, %v451
        %453 = vdwg.mxu0
        %454 = vmatprep.subr.bf16.mxu0 0
        %455 = vmatpush1.bf16.msra.mxu0 0
        %456 = vmatprep.subr.bf16.mxu0 0
        %457 = vmatpush1.bf16.msra.mxu0 0
        %458 = vmatprep.subr.bf16.mxu0 0
        %459 = vmatpush1.bf16.msra.mxu0 0
        %460 = vmatprep.subr.bf16.mxu0 0
        %461 = vmatpush1.bf16.msra.mxu0 0
        %462 = vmatprep.subr.bf16.mxu0 0
        %463 = vmatpush1.bf16.msra.mxu0 0
        %464 = vmatprep.subr.bf16.mxu0 0
        %465 = vmatpush1.bf16.msra.mxu0 0
        %466 = vmatprep.subr.bf16.mxu0 0
        %467 = vmatpush1.bf16.msra.mxu0 0
        %468 = vmatprep.subr.bf16.mxu0 %v409
        %469 = vmatpush1.bf16.msra.mxu0 %v406
        %470 = vmatprep.subr.bf16.mxu0 0
        %471 = vmatpush2.bf16.msra.mxu0 0
        %472 = vmatprep.subr.bf16.mxu0 0
        %473 = vmatpush2.bf16.msra.mxu0 0
        %474 = vmatprep.subr.bf16.mxu0 0
        %475 = vmatpush2.bf16.msra.mxu0 0
        %476 = vmatprep.subr.bf16.mxu0 0
        %477 = vmatpush2.bf16.msra.mxu0 0
        %478 = vmatprep.subr.bf16.mxu0 0
        %479 = vmatpush2.bf16.msra.mxu0 0
        %480 = vmatprep.subr.bf16.mxu0 0
        %481 = vmatpush2.bf16.msra.mxu0 0
        %482 = vmatprep.subr.bf16.mxu0 0
        %483 = vmatpush2.bf16.msra.mxu0 0
        %484 = vmatprep.subr.bf16.mxu0 0
        %485 = vmatpush2.bf16.msra.mxu0 0
        %486 = vmatprep.mubr.bf16.mxu0 0
        %487 = vmatmul.mubr.bf16.gmra.mxu0 %v396
        %v488 = vpop.f32.mrf.mxu0
        %v489 = vadd.f32 %v382, %v488
        %v490 = vpop.f32.mrf.mxu0
        %v491 = vadd.f32 %v382, %v490
        %v492 = vpop.f32.mrf.mxu0
        %v493 = vadd.f32 %v387, %v492
        %v494 = vpop.f32.mrf.mxu0
        %v495 = vadd.f32 %v387, %v494
        %496 = vdwg.mxu0
        %v497 = vmax.f32 %v446, 0.0
        %v498 = vmax.f32 %v448, 0.0
        %v499 = vmax.f32 %v489, 0.0
        %v500 = vmax.f32 %v491, 0.0
        %v501 = vld [vmem:[%s3] sm:$0xf]
        %v502 = vpack.c.bf16 %v497, %v497
        %v503 = vpack.c.bf16 %v498, %v498
        %v504 = vpack.c.bf16 %v499, %v499
        %v505 = vpack.c.bf16 %v500, %v500
        %v506 = vld [vmem:[%s4] sm:$0xff]
        %508 = vset.pattern.permute.xlu0 0
        %509 = vperm.xlu0 %508, %v506
        %v510 = vpop.permute.xlu0 %509
        %vm512 = vcmask 64512
        %v514 = vsel %vm512, %v501, 0
        %vm516 = vcmask 1043456
        %v518 = vsel %vm516, %v502, 0
        %v521 = vsel %vm516, %v503, 0
        %v524 = vsel %vm516, %v504, 0
        %v527 = vsel %vm516, %v505, 0
        %529 = vmatprep.subr.bf16.mxu0 0
        %530 = vmatpush1.bf16.msra.mxu0 0
        %531 = vmatprep.subr.bf16.mxu0 0
        %532 = vmatpush1.bf16.msra.mxu0 0
        %533 = vmatprep.subr.bf16.mxu0 0
        %534 = vmatpush1.bf16.msra.mxu0 0
        %535 = vmatprep.subr.bf16.mxu0 0
        %536 = vmatpush1.bf16.msra.mxu0 0
        %537 = vmatprep.subr.bf16.mxu0 0
        %538 = vmatpush1.bf16.msra.mxu0 0
        %539 = vmatprep.subr.bf16.mxu0 0
        %540 = vmatpush1.bf16.msra.mxu0 0
        %541 = vmatprep.subr.bf16.mxu0 0
        %542 = vmatpush1.bf16.msra.mxu0 0
        %543 = vmatprep.subr.bf16.mxu0 %v521
        %544 = vmatpush1.bf16.msra.mxu0 %v518
        %545 = vmatprep.subr.bf16.mxu0 0
        %546 = vmatpush2.bf16.msra.mxu0 0
        %547 = vmatprep.subr.bf16.mxu0 0
        %548 = vmatpush2.bf16.msra.mxu0 0
        %549 = vmatprep.subr.bf16.mxu0 0
        %550 = vmatpush2.bf16.msra.mxu0 0
        %551 = vmatprep.subr.bf16.mxu0 0
        %552 = vmatpush2.bf16.msra.mxu0 0
        %553 = vmatprep.subr.bf16.mxu0 0
        %554 = vmatpush2.bf16.msra.mxu0 0
        %555 = vmatprep.subr.bf16.mxu0 0
        %556 = vmatpush2.bf16.msra.mxu0 0
        %557 = vmatprep.subr.bf16.mxu0 0
        %558 = vmatpush2.bf16.msra.mxu0 0
        %559 = vmatprep.subr.bf16.mxu0 0
        %560 = vmatpush2.bf16.msra.mxu0 0
        %561 = vmatprep.mubr.bf16.mxu0 0
        %562 = vmatmul.mubr.bf16.gmra.mxu0 %v514
        %v563 = vpop.f32.mrf.mxu0
        %v564 = vadd.f32 %v510, %v563
        %v565 = vpop.f32.mrf.mxu0
        %v566 = vadd.f32 %v510, %v565
        %v567 = vpop.f32.mrf.mxu0
        %v568 = vpop.f32.mrf.mxu0
        %569 = vdwg.mxu0
        %570 = vmatprep.subr.bf16.mxu0 0
        %571 = vmatpush1.bf16.msra.mxu0 0
        %572 = vmatprep.subr.bf16.mxu0 0
        %573 = vmatpush1.bf16.msra.mxu0 0
        %574 = vmatprep.subr.bf16.mxu0 0
        %575 = vmatpush1.bf16.msra.mxu0 0
        %576 = vmatprep.subr.bf16.mxu0 0
        %577 = vmatpush1.bf16.msra.mxu0 0
        %578 = vmatprep.subr.bf16.mxu0 0
        %579 = vmatpush1.bf16.msra.mxu0 0
        %580 = vmatprep.subr.bf16.mxu0 0
        %581 = vmatpush1.bf16.msra.mxu0 0
        %582 = vmatprep.subr.bf16.mxu0 0
        %583 = vmatpush1.bf16.msra.mxu0 0
        %584 = vmatprep.subr.bf16.mxu0 %v527
        %585 = vmatpush1.bf16.msra.mxu0 %v524
        %586 = vmatprep.subr.bf16.mxu0 0
        %587 = vmatpush2.bf16.msra.mxu0 0
        %588 = vmatprep.subr.bf16.mxu0 0
        %589 = vmatpush2.bf16.msra.mxu0 0
        %590 = vmatprep.subr.bf16.mxu0 0
        %591 = vmatpush2.bf16.msra.mxu0 0
        %592 = vmatprep.subr.bf16.mxu0 0
        %593 = vmatpush2.bf16.msra.mxu0 0
        %594 = vmatprep.subr.bf16.mxu0 0
        %595 = vmatpush2.bf16.msra.mxu0 0
        %596 = vmatprep.subr.bf16.mxu0 0
        %597 = vmatpush2.bf16.msra.mxu0 0
        %598 = vmatprep.subr.bf16.mxu0 0
        %599 = vmatpush2.bf16.msra.mxu0 0
        %600 = vmatprep.subr.bf16.mxu0 0
        %601 = vmatpush2.bf16.msra.mxu0 0
        %602 = vmatprep.mubr.bf16.mxu0 0
        %603 = vmatmul.mubr.bf16.gmra.mxu0 %v514
        %v604 = vpop.f32.mrf.mxu0
        %v605 = vadd.f32 %v510, %v604
        %v606 = vpop.f32.mrf.mxu0
        %v607 = vadd.f32 %v510, %v606
        %v608 = vpop.f32.mrf.mxu0
        %v609 = vpop.f32.mrf.mxu0
        %610 = vdwg.mxu0
        %v611 = vmax.f32 %v564, 0.0
        %v612 = vmax.f32 %v566, 0.0
        %v613 = vmax.f32 %v605, 0.0
        %v614 = vmax.f32 %v607, 0.0
        %v615 = vadd.f32 %v611, %v450
        %v616 = vadd.f32 %v612, %v452
        %v617 = vadd.f32 %v613, %v493
        %v618 = vadd.f32 %v614, %v495
        %v619 = vmax.f32 %v615, 0.0
        %v620 = vmax.f32 %v616, 0.0
        %v621 = vmax.f32 %v617, 0.0
        %v622 = vmax.f32 %v618, 0.0
        %v623 = vpack.c.bf16 %v619, %v619
        %v624 = vpack.c.bf16 %v620, %v620
        %v625 = vpack.c.bf16 %v621, %v621
        %v626 = vpack.c.bf16 %v622, %v622
        %v627 = vld [vmem:[%s5] sm:$0xf]
        %v628 = vld [vmem:[%s6] sm:$0xff]
        %630 = vset.pattern.permute.xlu0 0
        %631 = vperm.xlu0 %630, %v628
        %v632 = vpop.permute.xlu0 %631
        %v635 = vsel %vm512, %v627, 0
        %v638 = vsel %vm516, %v623, 0
        %v641 = vsel %vm516, %v624, 0
        %v644 = vsel %vm516, %v625, 0
        %v647 = vsel %vm516, %v626, 0
        %649 = vmatprep.subr.bf16.mxu0 0
        %650 = vmatpush1.bf16.msra.mxu0 0
        %651 = vmatprep.subr.bf16.mxu0 0
        %652 = vmatpush1.bf16.msra.mxu0 0
        %653 = vmatprep.subr.bf16.mxu0 0
        %654 = vmatpush1.bf16.msra.mxu0 0
        %655 = vmatprep.subr.bf16.mxu0 0
        %656 = vmatpush1.bf16.msra.mxu0 0
        %657 = vmatprep.subr.bf16.mxu0 0
        %658 = vmatpush1.bf16.msra.mxu0 0
        %659 = vmatprep.subr.bf16.mxu0 0
        %660 = vmatpush1.bf16.msra.mxu0 0
        %661 = vmatprep.subr.bf16.mxu0 0
        %662 = vmatpush1.bf16.msra.mxu0 0
        %663 = vmatprep.subr.bf16.mxu0 %v641
        %664 = vmatpush1.bf16.msra.mxu0 %v638
        %665 = vmatprep.subr.bf16.mxu0 0
        %666 = vmatpush2.bf16.msra.mxu0 0
        %667 = vmatprep.subr.bf16.mxu0 0
        %668 = vmatpush2.bf16.msra.mxu0 0
        %669 = vmatprep.subr.bf16.mxu0 0
        %670 = vmatpush2.bf16.msra.mxu0 0
        %671 = vmatprep.subr.bf16.mxu0 0
        %672 = vmatpush2.bf16.msra.mxu0 0
        %673 = vmatprep.subr.bf16.mxu0 0
        %674 = vmatpush2.bf16.msra.mxu0 0
        %675 = vmatprep.subr.bf16.mxu0 0
        %676 = vmatpush2.bf16.msra.mxu0 0
        %677 = vmatprep.subr.bf16.mxu0 0
        %678 = vmatpush2.bf16.msra.mxu0 0
        %679 = vmatprep.subr.bf16.mxu0 0
        %680 = vmatpush2.bf16.msra.mxu0 0
        %681 = vmatprep.mubr.bf16.mxu0 0
        %682 = vmatmul.mubr.bf16.gmra.mxu0 %v635
        %v683 = vpop.f32.mrf.mxu0
        %v684 = vadd.f32 %v632, %v683
        %v685 = vpop.f32.mrf.mxu0
        %v686 = vadd.f32 %v632, %v685
        %v687 = vpop.f32.mrf.mxu0
        %v688 = vpop.f32.mrf.mxu0
        %689 = vdwg.mxu0
        %690 = vmatprep.subr.bf16.mxu0 0
        %691 = vmatpush1.bf16.msra.mxu0 0
        %692 = vmatprep.subr.bf16.mxu0 0
        %693 = vmatpush1.bf16.msra.mxu0 0
        %694 = vmatprep.subr.bf16.mxu0 0
        %695 = vmatpush1.bf16.msra.mxu0 0
        %696 = vmatprep.subr.bf16.mxu0 0
        %697 = vmatpush1.bf16.msra.mxu0 0
        %698 = vmatprep.subr.bf16.mxu0 0
        %699 = vmatpush1.bf16.msra.mxu0 0
        %700 = vmatprep.subr.bf16.mxu0 0
        %701 = vmatpush1.bf16.msra.mxu0 0
        %702 = vmatprep.subr.bf16.mxu0 0
        %703 = vmatpush1.bf16.msra.mxu0 0
        %704 = vmatprep.subr.bf16.mxu0 %v647
        %705 = vmatpush1.bf16.msra.mxu0 %v644
        %706 = vmatprep.subr.bf16.mxu0 0
        %707 = vmatpush2.bf16.msra.mxu0 0
        %708 = vmatprep.subr.bf16.mxu0 0
        %709 = vmatpush2.bf16.msra.mxu0 0
        %710 = vmatprep.subr.bf16.mxu0 0
        %711 = vmatpush2.bf16.msra.mxu0 0
        %712 = vmatprep.subr.bf16.mxu0 0
        %713 = vmatpush2.bf16.msra.mxu0 0
        %714 = vmatprep.subr.bf16.mxu0 0
        %715 = vmatpush2.bf16.msra.mxu0 0
        %716 = vmatprep.subr.bf16.mxu0 0
        %717 = vmatpush2.bf16.msra.mxu0 0
        %718 = vmatprep.subr.bf16.mxu0 0
        %719 = vmatpush2.bf16.msra.mxu0 0
        %720 = vmatprep.subr.bf16.mxu0 0
        %721 = vmatpush2.bf16.msra.mxu0 0
        %722 = vmatprep.mubr.bf16.mxu0 0
        %723 = vmatmul.mubr.bf16.gmra.mxu0 %v635
        %v724 = vpop.f32.mrf.mxu0
        %v725 = vadd.f32 %v632, %v724
        %v726 = vpop.f32.mrf.mxu0
        %v727 = vadd.f32 %v632, %v726
        %v728 = vpop.f32.mrf.mxu0
        %v729 = vpop.f32.mrf.mxu0
        %730 = vdwg.mxu0
        %v731 = vmax.f32 %v684, 0.0
        %v732 = vmax.f32 %v686, 0.0
        %v733 = vmax.f32 %v725, 0.0
        %v734 = vmax.f32 %v727, 0.0
        %v735 = vld [vmem:[%s7] sm:$0xf]
        %v736 = vpack.c.bf16 %v731, %v731
        %v737 = vpack.c.bf16 %v732, %v732
        %v738 = vpack.c.bf16 %v733, %v733
        %v739 = vpack.c.bf16 %v734, %v734
        %v740 = vld [vmem:[%s8] sm:$0xff]
        %742 = vset.pattern.permute.xlu0 0
        %743 = vperm.xlu0 %742, %v740
        %v744 = vpop.permute.xlu0 %743
        %v747 = vsel %vm512, %v735, 0
        %v750 = vsel %vm516, %v736, 0
        %v753 = vsel %vm516, %v737, 0
        %v756 = vsel %vm516, %v738, 0
        %v759 = vsel %vm516, %v739, 0
        %761 = vmatprep.subr.bf16.mxu0 0
        %762 = vmatpush1.bf16.msra.mxu0 0
        %763 = vmatprep.subr.bf16.mxu0 0
        %764 = vmatpush1.bf16.msra.mxu0 0
        %765 = vmatprep.subr.bf16.mxu0 0
        %766 = vmatpush1.bf16.msra.mxu0 0
        %767 = vmatprep.subr.bf16.mxu0 0
        %768 = vmatpush1.bf16.msra.mxu0 0
        %769 = vmatprep.subr.bf16.mxu0 0
        %770 = vmatpush1.bf16.msra.mxu0 0
        %771 = vmatprep.subr.bf16.mxu0 0
        %772 = vmatpush1.bf16.msra.mxu0 0
        %773 = vmatprep.subr.bf16.mxu0 0
        %774 = vmatpush1.bf16.msra.mxu0 0
        %775 = vmatprep.subr.bf16.mxu0 %v753
        %776 = vmatpush1.bf16.msra.mxu0 %v750
        %777 = vmatprep.subr.bf16.mxu0 0
        %778 = vmatpush2.bf16.msra.mxu0 0
        %779 = vmatprep.subr.bf16.mxu0 0
        %780 = vmatpush2.bf16.msra.mxu0 0
        %781 = vmatprep.subr.bf16.mxu0 0
        %782 = vmatpush2.bf16.msra.mxu0 0
        %783 = vmatprep.subr.bf16.mxu0 0
        %784 = vmatpush2.bf16.msra.mxu0 0
        %785 = vmatprep.subr.bf16.mxu0 0
        %786 = vmatpush2.bf16.msra.mxu0 0
        %787 = vmatprep.subr.bf16.mxu0 0
        %788 = vmatpush2.bf16.msra.mxu0 0
        %789 = vmatprep.subr.bf16.mxu0 0
        %790 = vmatpush2.bf16.msra.mxu0 0
        %791 = vmatprep.subr.bf16.mxu0 0
        %792 = vmatpush2.bf16.msra.mxu0 0
        %793 = vmatprep.mubr.bf16.mxu0 0
        %794 = vmatmul.mubr.bf16.gmra.mxu0 %v747
        %v795 = vpop.f32.mrf.mxu0
        %v796 = vadd.f32 %v744, %v795
        %v797 = vpop.f32.mrf.mxu0
        %v798 = vadd.f32 %v744, %v797
        %v799 = vpop.f32.mrf.mxu0
        %v800 = vpop.f32.mrf.mxu0
        %801 = vdwg.mxu0
        %802 = vmatprep.subr.bf16.mxu0 0
        %803 = vmatpush1.bf16.msra.mxu0 0
        %804 = vmatprep.subr.bf16.mxu0 0
        %805 = vmatpush1.bf16.msra.mxu0 0
        %806 = vmatprep.subr.bf16.mxu0 0
        %807 = vmatpush1.bf16.msra.mxu0 0
        %808 = vmatprep.subr.bf16.mxu0 0
        %809 = vmatpush1.bf16.msra.mxu0 0
        %810 = vmatprep.subr.bf16.mxu0 0
        %811 = vmatpush1.bf16.msra.mxu0 0
        %812 = vmatprep.subr.bf16.mxu0 0
        %813 = vmatpush1.bf16.msra.mxu0 0
        %814 = vmatprep.subr.bf16.mxu0 0
        %815 = vmatpush1.bf16.msra.mxu0 0
        %816 = vmatprep.subr.bf16.mxu0 %v759
        %817 = vmatpush1.bf16.msra.mxu0 %v756
        %818 = vmatprep.subr.bf16.mxu0 0
        %819 = vmatpush2.bf16.msra.mxu0 0
        %820 = vmatprep.subr.bf16.mxu0 0
        %821 = vmatpush2.bf16.msra.mxu0 0
        %822 = vmatprep.subr.bf16.mxu0 0
        %823 = vmatpush2.bf16.msra.mxu0 0
        %824 = vmatprep.subr.bf16.mxu0 0
        %825 = vmatpush2.bf16.msra.mxu0 0
        %826 = vmatprep.subr.bf16.mxu0 0
        %827 = vmatpush2.bf16.msra.mxu0 0
        %828 = vmatprep.subr.bf16.mxu0 0
        %829 = vmatpush2.bf16.msra.mxu0 0
        %830 = vmatprep.subr.bf16.mxu0 0
        %831 = vmatpush2.bf16.msra.mxu0 0
        %832 = vmatprep.subr.bf16.mxu0 0
        %833 = vmatpush2.bf16.msra.mxu0 0
        %834 = vmatprep.mubr.bf16.mxu0 0
        %835 = vmatmul.mubr.bf16.gmra.mxu0 %v747
        %v836 = vpop.f32.mrf.mxu0
        %v837 = vadd.f32 %v744, %v836
        %v838 = vpop.f32.mrf.mxu0
        %v839 = vadd.f32 %v744, %v838
        %v840 = vpop.f32.mrf.mxu0
        %v841 = vpop.f32.mrf.mxu0
        %842 = vdwg.mxu0
        %v843 = vmax.f32 %v796, 0.0
        %v844 = vmax.f32 %v798, 0.0
        %v845 = vmax.f32 %v837, 0.0
        %v846 = vmax.f32 %v839, 0.0
        %v847 = vadd.f32 %v843, %v619
        %v848 = vadd.f32 %v844, %v620
        %v849 = vadd.f32 %v845, %v621
        %v850 = vadd.f32 %v846, %v622
        %v851 = vmax.f32 %v847, 0.0
        %v852 = vmax.f32 %v848, 0.0
        %v853 = vmax.f32 %v849, 0.0
        %v854 = vmax.f32 %v850, 0.0
        %855 = vst [vmem:[%s350] sm:$0xff] %v851
        %856 = vst [vmem:[%s350 + $0x8] sm:$0xff] %v852
        %857 = vst [vmem:[%s350 + $0x10] sm:$0xff] %v853
        %858 = vst [vmem:[%s350 + $0x18] sm:$0xff] %v854
        %s859 = sand.u32 %s241, 1
        %s860 = scalar_lea.sflag [#allocation3], %s859
        %s861 = sand.u32 %s241, 1
        %s862 = smul.addr %s861, 32
        %s863 = scalar_lea.vmem [#allocation2], %s862
        // Predicated region
        $region57: #{tpu_custom_call.1} parent=55 // pred_check
          %p864 = pneg %p251
        $region58: #{tpu_custom_call.1} parent=55 // pred_check_branch
          %866 = sbr.rel (%p864) target = $region60
        $region59: #{tpu_custom_call.1} parent=55 // pred_region
          %s867 = smul.u32 4, %s28
          %s869 = ssub.s32 512, 512
          %870 = vsyncadd %s860, %s869
          %s871 = smul.addr %s27, 4
          %s872 = sadd.s32 %s867, %s871
          %s873 = smul.addr %s872, 128
          %s874 = scalar_lea.hbm %s9, %s873
          %s876 = sshll.u32 %s863, 4
          %s877 = int_to_ptr.vmem [resolvable:$true] %s876
          %879 = dma.vmem_to_hbm [thread:$0]  %s877, 512, %s874, %s860
        $region60: #{tpu_custom_call.1} parent=55 // pred_fallthru
          _
      $region56: #{tpu_custom_call.1} parent=5 // pred_fallthru
        _
      %p880 = scmp.le.s32.totalorder 2, %s18
      // Predicated region
      $region61: #{tpu_custom_call.1} parent=5 // pred_check
        %p881 = pneg %p880
      $region62: #{tpu_custom_call.1} parent=5 // pred_check_branch
        %883 = sbr.rel (%p881) target = $region64
      $region63: #{tpu_custom_call.1} parent=5 // pred_region
        %s884 = ssub.s32 %s18, 2
        // Predicated region
        $region65: #{tpu_custom_call.1} parent=63 // pred_check
          %p885 = pneg %p257
        $region66: #{tpu_custom_call.1} parent=63 // pred_check_branch
          %887 = sbr.rel (%p885) target = $region68
        $region67: #{tpu_custom_call.1} parent=63 // pred_region
          %s888 = sand.u32 %s242, 1
          %s889 = scalar_lea.sflag [#allocation3], %s888
          %s890 = sand.u32 %s242, 1
          %s891 = smul.addr %s890, 32
          %s892 = scalar_lea.vmem [#allocation2], %s891
          %893 = dma.done %s889, 512
        $region68: #{tpu_custom_call.1} parent=63 // pred_fallthru
          _
      $region64: #{tpu_custom_call.1} parent=5 // pred_fallthru
        _
    $region6: #{tpu_custom_call.1} parent=1 // loop_footer
      %s22 = sadd.s32 1, %s18
    $region7: #{tpu_custom_call.1} parent=1 // loop_footer_branch
      %17 = sbr.rel target = $region3
    $region8: #{tpu_custom_call.1} parent=1 // loop_exit
      _
    %894 = vsyncpa [#allocation3], 1
    %s895 = scalar_lea.sflag [#allocation3], 1
    %896 = vsyncpa %s895, 1

</llo_original>
